<compile_context>
chip_gen: v7x
topology: tpu7x:2x2x1
jax: 0.10.0
libtpu: 0.0.40
codegen_flags: <defaults>
</compile_context>

<pallas_src>
import functools

import jax
import jax.numpy as jnp
from jax.experimental import pallas as pl
from jax.experimental.pallas import tpu as pltpu


# ----------------------------- Pallas kernel ---------------------------------
def _shader_kernel(aux_ref, fn_ref, out_ref, *, K, sigma, gamma, bg, znear, zfar, eps):
    # aux rows: [0, 3K)   pre-masked barycentric weights, row = v*K + k
    #           [3K, 4K)  zbuf   (== zfar at misses  -> z_inv = 0)
    #           [4K, 5K)  dists  (== +LARGE at misses -> prob = 0)
    aux = aux_ref[...]                                   # (5K, TP) f32
    fnf = fn_ref[...].astype(jnp.float32)                # (9K, TP), row = c*3K + v*K + k

    bary  = aux[0:3 * K, :]                              # (3K, TP)
    zbuf  = aux[3 * K:4 * K, :]                          # (K, TP)
    dists = aux[4 * K:5 * K, :]                          # (K, TP)

    # ---- softmax_rgb_blend weights ----
    # sigmoid(-dists / sigma) written explicitly via exp (safe limits at +-inf);
    # misses already carry dists = +LARGE, so prob == 0 there without a mask mul.
    prob = 1.0 / (1.0 + jnp.exp(dists * (1.0 / sigma)))                 # (K, TP)

    one_minus = 1.0 - prob
    alpha = one_minus[0:1, :]                            # product over K (sublane rows)
    for k in range(1, K):
        alpha = alpha * one_minus[k:k + 1, :]            # (1, TP)

    z_inv = (zfar - zbuf) * (1.0 / (zfar - znear))                       # (K, TP), 0 at misses
    z_inv_max = jnp.maximum(jnp.max(z_inv, axis=0, keepdims=True), eps)  # (1, TP)
    weights_num = prob * jnp.exp((z_inv - z_inv_max) * (1.0 / gamma))    # (K, TP)
    delta = jnp.maximum(jnp.exp((eps - z_inv_max) * (1.0 / gamma)), eps) # (1, TP)
    denom = jnp.sum(weights_num, axis=0, keepdims=True) + delta          # (1, TP)
    inv_denom = 1.0 / denom
    weights = weights_num * inv_denom                                    # (K, TP)
    w_bg = delta * inv_denom                                             # (1, TP)

    # ---- phong_normal_shading + weighted blend, per output channel ----
    flip = (1.0, -1.0, -1.0)                             # python floats: no captured consts
    for c in range(3):
        fn_c = fnf[c * 3 * K:(c + 1) * 3 * K, :]         # (3K, TP), rows (v, k)
        normal_c = (bary[0:K, :]           * fn_c[0:K, :]
                    + bary[K:2 * K, :]     * fn_c[K:2 * K, :]
                    + bary[2 * K:3 * K, :] * fn_c[2 * K:3 * K, :])       # (K, TP), 0 at misses
        col_c = (normal_c * flip[c] + 1.0) * 0.5         # (K, TP)
        rgb_c = jnp.sum(weights * col_c, axis=0, keepdims=True) + w_bg * bg[c]  # (1, TP)
        out_ref[c:c + 1, :] = rgb_c

    out_ref[3:4, :] = 1.0 - alpha


# ------------------------------- wrapper --------------------------------------
def soft_phong_normal_shader_forward(pix_to_face, bary_coords, zbuf, dists,
                                     faces, verts_normals, *,
                                     sigma=1e-4, gamma=1e-4,
                                     background_color=(1.0, 1.0, 1.0),
                                     znear=1.0, zfar=100.0,
                                     tile_p=4096, normals_dtype=jnp.bfloat16):
    N, H, W, K = pix_to_face.shape
    P = N * H * W

    # ---- pre-mask in pixel-major, then re-layout to channel-major (pixels on lanes) ----
    p2f = pix_to_face.reshape(P, K)                                      # (P, K) i32
    hit = p2f >= 0                                                       # (P, K) bool
    hitf = hit.astype(jnp.float32)

    bary_m = bary_coords.reshape(P, K, 3).astype(jnp.float32) * hitf[..., None]
    zbuf_m = jnp.where(hit, zbuf.reshape(P, K).astype(jnp.float32), jnp.float32(zfar))
    dists_m = jnp.where(hit, dists.reshape(P, K).astype(jnp.float32), jnp.float32(1e30))

    bary_t = jnp.transpose(bary_m, (2, 1, 0)).reshape(3 * K, P)          # row = v*K + k
    zbuf_t = zbuf_m.T                                                    # (K, P)
    dists_t = dists_m.T                                                  # (K, P)
    aux = jnp.concatenate([bary_t, zbuf_t, dists_t], axis=0)             # (5K, P) f32

    # Gather per-face vertex normals directly into channel-major layout (bf16 storage).
    # TODO(synk): for meshes whose faces_normals table fits in VMEM the gather could move
    #             into the kernel to cut the intermediate HBM materialization;
    #             materials.use_normal_map branch (apply_normal_map) not implemented
    #             (default Materials has it disabled).
    fn_table = jnp.transpose(verts_normals[faces], (2, 1, 0))            # (3_c, 3_v, F)
    safe_idx = jnp.where(hit, p2f, 0).T                                  # (K, P)
    fn_t = fn_table[:, :, safe_idx]                                      # (3_c, 3_v, K, P)
    fn_t = fn_t.reshape(9 * K, P).astype(normals_dtype)                  # row = c*3K + v*K + k

    # ---- pixel tiling: lane-dense, multiple of 128, padded if needed ----
    tile_p = max(128, (int(tile_p) // 128) * 128)
    tile_p = min(tile_p, pl.cdiv(P, 128) * 128)
    P_pad = pl.cdiv(P, tile_p) * tile_p
    if P_pad != P:
        aux = jnp.pad(aux, ((0, 0), (0, P_pad - P)))
        fn_t = jnp.pad(fn_t, ((0, 0), (0, P_pad - P)))

    kernel = functools.partial(
        _shader_kernel, K=K,
        sigma=float(sigma), gamma=float(gamma),
        bg=tuple(float(c) for c in background_color),
        znear=float(znear), zfar=float(zfar), eps=1e-10)

    out = pl.pallas_call(
        kernel,
        out_shape=jax.ShapeDtypeStruct((4, P_pad), jnp.float32),
        grid_spec=pltpu.PrefetchScalarGridSpec(
            num_scalar_prefetch=0,
            grid=(P_pad // tile_p,),
            in_specs=[
                pl.BlockSpec((5 * K, tile_p), lambda i: (0, i)),   # packed f32 scalars
                pl.BlockSpec((9 * K, tile_p), lambda i: (0, i)),   # gathered normals (bf16)
            ],
            out_specs=pl.BlockSpec((4, tile_p), lambda i: (0, i)),  # lane-dense RGBA
        ),
        compiler_params=pltpu.CompilerParams(dimension_semantics=("parallel",)),
    )(aux, fn_t)

    return out[:, :P].T.reshape(N, H, W, 4)


class SoftPhongNormalShader:
    """JAX/Pallas port of the PyTorch SoftPhongNormalShader (normal-shading variant)."""

    def __init__(self, sigma=1e-4, gamma=1e-4, background_color=(1.0, 1.0, 1.0),
                 znear=1.0, zfar=100.0, normals_dtype=jnp.bfloat16, tile_p=4096):
        # BlendParams defaults; cameras supply znear/zfar (defaults 1.0 / 100.0).
        self.sigma = sigma
        self.gamma = gamma
        self.background_color = background_color
        self.znear = znear
        self.zfar = zfar
        self.normals_dtype = normals_dtype
        self.tile_p = tile_p

    def __call__(self, pix_to_face, bary_coords, zbuf, dists, faces, verts_normals):
        return soft_phong_normal_shader_forward(
            pix_to_face, bary_coords, zbuf, dists, faces, verts_normals,
            sigma=self.sigma, gamma=self.gamma,
            background_color=self.background_color,
            znear=self.znear, zfar=self.zfar,
            normals_dtype=self.normals_dtype, tile_p=self.tile_p)


# ----------------------------- pure-JAX reference ------------------------------
def _reference_forward(pix_to_face, bary, zbuf, dists, faces, verts_normals,
                       sigma, gamma, bg, znear, zfar):
    eps = 1e-10
    faces_normals = verts_normals[faces]                            # (F, 3, 3)
    mask = pix_to_face < 0
    idx = jnp.where(mask, 0, pix_to_face)
    pixel_face_normals = faces_normals[idx]                         # (N,H,W,K,3,3)
    pixel_normals = (bary[..., None] * pixel_face_normals).sum(-2)  # (N,H,W,K,3)
    pixel_normals = jnp.where(mask[..., None], 0.0, pixel_normals)
    pixel_normals = pixel_normals * jnp.array([1.0, -1.0, -1.0])
    colors = (pixel_normals + 1.0) / 2.0                            # (N,H,W,K,3)

    maskf = (pix_to_face >= 0).astype(jnp.float32)
    prob = jax.nn.sigmoid(-dists / sigma) * maskf
    alpha = jnp.prod(1.0 - prob, axis=-1)
    z_inv = (zfar - zbuf) / (zfar - znear) * maskf
    z_inv_max = jnp.maximum(jnp.max(z_inv, -1, keepdims=True), eps)
    weights_num = prob * jnp.exp((z_inv - z_inv_max) / gamma)
    delta = jnp.maximum(jnp.exp((eps - z_inv_max) / gamma), eps)
    denom = weights_num.sum(-1, keepdims=True) + delta
    weights = weights_num / denom
    weighted_colors = (weights[..., None] * colors).sum(-2)
    weighted_bg = (delta / denom) * jnp.array(bg, jnp.float32)
    rgb = weighted_colors + weighted_bg
    a = 1.0 - alpha
    return jnp.concatenate([rgb, a[..., None]], axis=-1)


# ----------------------------------- main --------------------------------------
if __name__ == "__main__":
    N, H, W, K = 2, 16, 16, 2
    V, F = 24, 12

    key = jax.random.PRNGKey(0)
    k1, k2, k3, k4, k5, k6 = jax.random.split(key, 6)

    verts_normals = jax.random.normal(k1, (V, 3), dtype=jnp.float32)
    verts_normals = verts_normals / jnp.linalg.norm(verts_normals, axis=-1, keepdims=True)
    faces = jax.random.randint(k2, (F, 3), 0, V, dtype=jnp.int32)

    pix_to_face = jax.random.randint(k3, (N, H, W, K), -1, F, dtype=jnp.int32)
    bary_coords = jax.random.uniform(k4, (N, H, W, K, 3), minval=0.01, maxval=1.0)
    bary_coords = bary_coords / bary_coords.sum(-1, keepdims=True)
    zbuf = jax.random.uniform(k5, (N, H, W, K), minval=1.0, maxval=100.0)
    zbuf = jnp.where(pix_to_face < 0, -1.0, zbuf)
    dists = jax.random.normal(k6, (N, H, W, K), dtype=jnp.float32) * 1e-4  # signed sq. dists

    ref = _reference_forward(pix_to_face, bary_coords, zbuf, dists, faces, verts_normals,
                             1e-4, 1e-4, (1.0, 1.0, 1.0), 1.0, 100.0)
    ref = jax.block_until_ready(ref)

    # Fast path: bf16 storage for gathered normals.
    shader = SoftPhongNormalShader()
    images = shader(pix_to_face, bary_coords, zbuf, dists, faces, verts_normals)
    images = jax.block_until_ready(images)
    assert images.shape == (N, H, W, 4), images.shape
    assert jnp.allclose(images, ref, rtol=0.0, atol=5e-3), \
        f"bf16 path max abs err = {jnp.max(jnp.abs(images - ref))}"

    # Tight numerical check with f32 normals.
    images_f32 = soft_phong_normal_shader_forward(
        pix_to_face, bary_coords, zbuf, dists, faces, verts_normals,
        normals_dtype=jnp.float32)
    images_f32 = jax.block_until_ready(images_f32)
    assert jnp.allclose(images_f32, ref, rtol=1e-4, atol=1e-4), \
        f"f32 path max abs err = {jnp.max(jnp.abs(images_f32 - ref))}"

    print("KERNEL_OK")
</pallas_src>

<mosaic_0001>
module attributes {stable_mosaic.version = 11 : i64} {
  func.func @_shader_kernel(%arg0: i32, %arg1: memref<10x512xf32, #tpu.memory_space<vmem>>, %arg2: memref<18x512xbf16, #tpu.memory_space<vmem>>, %arg3: memref<4x512xf32, #tpu.memory_space<vmem>>) attributes {dimension_semantics = [#tpu.dimension_semantics<parallel>], iteration_bounds = array<i64: 1>, scalar_prefetch = 0 : i64, scratch_operands = 0 : i64, tpu.core_type = #tpu.core_type<tc>, window_params = [{transform_indices = @transform_0, window_bounds = array<i64: 10, 512>}, {transform_indices = @transform_1, window_bounds = array<i64: 18, 512>}, {transform_indices = @transform_2, window_bounds = array<i64: 4, 512>}]} {
    %c0 = arith.constant 0 : index
    %c0_0 = arith.constant 0 : index
    %0 = vector.load %arg1[%c0, %c0_0] : memref<10x512xf32, #tpu.memory_space<vmem>>, vector<10x512xf32>
    %c0_1 = arith.constant 0 : index
    %c0_2 = arith.constant 0 : index
    %1 = vector.load %arg2[%c0_1, %c0_2] : memref<18x512xbf16, #tpu.memory_space<vmem>>, vector<18x512xbf16>
    %2 = arith.extf %1 : vector<18x512xbf16> to vector<18x512xf32>
    %3 = vector.extract_strided_slice %0 {offsets = [0, 0], sizes = [6, 512], strides = [1, 1]} : vector<10x512xf32> to vector<6x512xf32>
    %4 = vector.extract_strided_slice %0 {offsets = [6, 0], sizes = [2, 512], strides = [1, 1]} : vector<10x512xf32> to vector<2x512xf32>
    %5 = vector.extract_strided_slice %0 {offsets = [8, 0], sizes = [2, 512], strides = [1, 1]} : vector<10x512xf32> to vector<2x512xf32>
    %cst = arith.constant 1.000000e+04 : f32
    %6 = vector.broadcast %cst : f32 to vector<2x512xf32>
    %7 = arith.mulf %5, %6 : vector<2x512xf32>
    %8 = math.exp %7 : vector<2x512xf32>
    %cst_3 = arith.constant 1.000000e+00 : f32
    %9 = vector.broadcast %cst_3 : f32 to vector<2x512xf32>
    %10 = arith.addf %9, %8 : vector<2x512xf32>
    %cst_4 = arith.constant 1.000000e+00 : f32
    %11 = vector.broadcast %cst_4 : f32 to vector<2x512xf32>
    %12 = arith.divf %11, %10 : vector<2x512xf32>
    %cst_5 = arith.constant 1.000000e+00 : f32
    %13 = vector.broadcast %cst_5 : f32 to vector<2x512xf32>
    %14 = arith.subf %13, %12 : vector<2x512xf32>
    %15 = vector.extract_strided_slice %14 {offsets = [0, 0], sizes = [1, 512], strides = [1, 1]} : vector<2x512xf32> to vector<1x512xf32>
    %16 = vector.extract_strided_slice %14 {offsets = [1, 0], sizes = [1, 512], strides = [1, 1]} : vector<2x512xf32> to vector<1x512xf32>
    %17 = arith.mulf %15, %16 : vector<1x512xf32>
    %cst_6 = arith.constant 1.000000e+02 : f32
    %18 = vector.broadcast %cst_6 : f32 to vector<2x512xf32>
    %19 = arith.subf %18, %4 : vector<2x512xf32>
    %cst_7 = arith.constant 0.0101010101 : f32
    %20 = vector.broadcast %cst_7 : f32 to vector<2x512xf32>
    %21 = arith.mulf %19, %20 : vector<2x512xf32>
    %cst_8 = arith.constant dense<0xFF800000> : vector<512xf32>
    %22 = vector.multi_reduction <maximumf>, %21, %cst_8 [0] : vector<2x512xf32> to vector<512xf32>
    %23 = vector.shape_cast %22 : vector<512xf32> to vector<1x512xf32>
    %cst_9 = arith.constant 1.000000e-10 : f32
    %24 = vector.broadcast %cst_9 : f32 to vector<1x512xf32>
    %25 = arith.maximumf %23, %24 : vector<1x512xf32>
    %26 = vector.broadcast %25 : vector<1x512xf32> to vector<2x512xf32>
    %27 = arith.subf %21, %26 : vector<2x512xf32>
    %cst_10 = arith.constant 1.000000e+04 : f32
    %28 = vector.broadcast %cst_10 : f32 to vector<2x512xf32>
    %29 = arith.mulf %27, %28 : vector<2x512xf32>
    %30 = math.exp %29 : vector<2x512xf32>
    %31 = arith.mulf %12, %30 : vector<2x512xf32>
    %cst_11 = arith.constant 1.000000e-10 : f32
    %32 = vector.broadcast %cst_11 : f32 to vector<1x512xf32>
    %33 = arith.subf %32, %25 : vector<1x512xf32>
    %cst_12 = arith.constant 1.000000e+04 : f32
    %34 = vector.broadcast %cst_12 : f32 to vector<1x512xf32>
    %35 = arith.mulf %33, %34 : vector<1x512xf32>
    %36 = math.exp %35 : vector<1x512xf32>
    %cst_13 = arith.constant 1.000000e-10 : f32
    %37 = vector.broadcast %cst_13 : f32 to vector<1x512xf32>
    %38 = arith.maximumf %36, %37 : vector<1x512xf32>
    %cst_14 = arith.constant dense<0.000000e+00> : vector<512xf32>
    %39 = vector.multi_reduction <add>, %31, %cst_14 [0] : vector<2x512xf32> to vector<512xf32>
    %40 = vector.shape_cast %39 : vector<512xf32> to vector<1x512xf32>
    %41 = arith.addf %40, %38 : vector<1x512xf32>
    %cst_15 = arith.constant 1.000000e+00 : f32
    %42 = vector.broadcast %cst_15 : f32 to vector<1x512xf32>
    %43 = arith.divf %42, %41 : vector<1x512xf32>
    %44 = vector.broadcast %43 : vector<1x512xf32> to vector<2x512xf32>
    %45 = arith.mulf %31, %44 : vector<2x512xf32>
    %46 = arith.mulf %38, %43 : vector<1x512xf32>
    %47 = vector.extract_strided_slice %2 {offsets = [0, 0], sizes = [6, 512], strides = [1, 1]} : vector<18x512xf32> to vector<6x512xf32>
    %48 = vector.extract_strided_slice %3 {offsets = [0, 0], sizes = [2, 512], strides = [1, 1]} : vector<6x512xf32> to vector<2x512xf32>
    %49 = vector.extract_strided_slice %47 {offsets = [0, 0], sizes = [2, 512], strides = [1, 1]} : vector<6x512xf32> to vector<2x512xf32>
    %50 = arith.mulf %48, %49 : vector<2x512xf32>
    %51 = vector.extract_strided_slice %3 {offsets = [2, 0], sizes = [2, 512], strides = [1, 1]} : vector<6x512xf32> to vector<2x512xf32>
    %52 = vector.extract_strided_slice %47 {offsets = [2, 0], sizes = [2, 512], strides = [1, 1]} : vector<6x512xf32> to vector<2x512xf32>
    %53 = arith.mulf %51, %52 : vector<2x512xf32>
    %54 = arith.addf %50, %53 : vector<2x512xf32>
    %55 = vector.extract_strided_slice %3 {offsets = [4, 0], sizes = [2, 512], strides = [1, 1]} : vector<6x512xf32> to vector<2x512xf32>
    %56 = vector.extract_strided_slice %47 {offsets = [4, 0], sizes = [2, 512], strides = [1, 1]} : vector<6x512xf32> to vector<2x512xf32>
    %57 = arith.mulf %55, %56 : vector<2x512xf32>
    %58 = arith.addf %54, %57 : vector<2x512xf32>
    %cst_16 = arith.constant 1.000000e+00 : f32
    %59 = vector.broadcast %cst_16 : f32 to vector<2x512xf32>
    %60 = arith.mulf %58, %59 : vector<2x512xf32>
    %cst_17 = arith.constant 1.000000e+00 : f32
    %61 = vector.broadcast %cst_17 : f32 to vector<2x512xf32>
    %62 = arith.addf %60, %61 : vector<2x512xf32>
    %cst_18 = arith.constant 5.000000e-01 : f32
    %63 = vector.broadcast %cst_18 : f32 to vector<2x512xf32>
    %64 = arith.mulf %62, %63 : vector<2x512xf32>
    %65 = arith.mulf %45, %64 : vector<2x512xf32>
    %cst_19 = arith.constant dense<0.000000e+00> : vector<512xf32>
    %66 = vector.multi_reduction <add>, %65, %cst_19 [0] : vector<2x512xf32> to vector<512xf32>
    %67 = vector.shape_cast %66 : vector<512xf32> to vector<1x512xf32>
    %cst_20 = arith.constant 1.000000e+00 : f32
    %68 = vector.broadcast %cst_20 : f32 to vector<1x512xf32>
    %69 = arith.mulf %46, %68 : vector<1x512xf32>
    %70 = arith.addf %67, %69 : vector<1x512xf32>
    %c0_21 = arith.constant 0 : index
    %c0_22 = arith.constant 0 : index
    %71 = vector.load %arg3[%c0_21, %c0_22] : memref<4x512xf32, #tpu.memory_space<vmem>>, vector<1x512xf32>
    tpu.vector_store %arg3[%c0_21, %c0_22], %70 {strides = array<i32>} : memref<4x512xf32, #tpu.memory_space<vmem>>, vector<1x512xf32>,
    %72 = vector.extract_strided_slice %2 {offsets = [6, 0], sizes = [6, 512], strides = [1, 1]} : vector<18x512xf32> to vector<6x512xf32>
    %73 = vector.extract_strided_slice %3 {offsets = [0, 0], sizes = [2, 512], strides = [1, 1]} : vector<6x512xf32> to vector<2x512xf32>
    %74 = vector.extract_strided_slice %72 {offsets = [0, 0], sizes = [2, 512], strides = [1, 1]} : vector<6x512xf32> to vector<2x512xf32>
    %75 = arith.mulf %73, %74 : vector<2x512xf32>
    %76 = vector.extract_strided_slice %3 {offsets = [2, 0], sizes = [2, 512], strides = [1, 1]} : vector<6x512xf32> to vector<2x512xf32>
    %77 = vector.extract_strided_slice %72 {offsets = [2, 0], sizes = [2, 512], strides = [1, 1]} : vector<6x512xf32> to vector<2x512xf32>
    %78 = arith.mulf %76, %77 : vector<2x512xf32>
    %79 = arith.addf %75, %78 : vector<2x512xf32>
    %80 = vector.extract_strided_slice %3 {offsets = [4, 0], sizes = [2, 512], strides = [1, 1]} : vector<6x512xf32> to vector<2x512xf32>
    %81 = vector.extract_strided_slice %72 {offsets = [4, 0], sizes = [2, 512], strides = [1, 1]} : vector<6x512xf32> to vector<2x512xf32>
    %82 = arith.mulf %80, %81 : vector<2x512xf32>
    %83 = arith.addf %79, %82 : vector<2x512xf32>
    %cst_23 = arith.constant -1.000000e+00 : f32
    %84 = vector.broadcast %cst_23 : f32 to vector<2x512xf32>
    %85 = arith.mulf %83, %84 : vector<2x512xf32>
    %cst_24 = arith.constant 1.000000e+00 : f32
    %86 = vector.broadcast %cst_24 : f32 to vector<2x512xf32>
    %87 = arith.addf %85, %86 : vector<2x512xf32>
    %cst_25 = arith.constant 5.000000e-01 : f32
    %88 = vector.broadcast %cst_25 : f32 to vector<2x512xf32>
    %89 = arith.mulf %87, %88 : vector<2x512xf32>
    %90 = arith.mulf %45, %89 : vector<2x512xf32>
    %cst_26 = arith.constant dense<0.000000e+00> : vector<512xf32>
    %91 = vector.multi_reduction <add>, %90, %cst_26 [0] : vector<2x512xf32> to vector<512xf32>
    %92 = vector.shape_cast %91 : vector<512xf32> to vector<1x512xf32>
    %cst_27 = arith.constant 1.000000e+00 : f32
    %93 = vector.broadcast %cst_27 : f32 to vector<1x512xf32>
    %94 = arith.mulf %46, %93 : vector<1x512xf32>
    %95 = arith.addf %92, %94 : vector<1x512xf32>
    %c1 = arith.constant 1 : index
    %c0_28 = arith.constant 0 : index
    %96 = vector.load %arg3[%c1, %c0_28] : memref<4x512xf32, #tpu.memory_space<vmem>>, vector<1x512xf32>
    tpu.vector_store %arg3[%c1, %c0_28], %95 {strides = array<i32>} : memref<4x512xf32, #tpu.memory_space<vmem>>, vector<1x512xf32>,
    %97 = vector.extract_strided_slice %2 {offsets = [12, 0], sizes = [6, 512], strides = [1, 1]} : vector<18x512xf32> to vector<6x512xf32>
    %98 = vector.extract_strided_slice %3 {offsets = [0, 0], sizes = [2, 512], strides = [1, 1]} : vector<6x512xf32> to vector<2x512xf32>
    %99 = vector.extract_strided_slice %97 {offsets = [0, 0], sizes = [2, 512], strides = [1, 1]} : vector<6x512xf32> to vector<2x512xf32>
    %100 = arith.mulf %98, %99 : vector<2x512xf32>
    %101 = vector.extract_strided_slice %3 {offsets = [2, 0], sizes = [2, 512], strides = [1, 1]} : vector<6x512xf32> to vector<2x512xf32>
    %102 = vector.extract_strided_slice %97 {offsets = [2, 0], sizes = [2, 512], strides = [1, 1]} : vector<6x512xf32> to vector<2x512xf32>
    %103 = arith.mulf %101, %102 : vector<2x512xf32>
    %104 = arith.addf %100, %103 : vector<2x512xf32>
    %105 = vector.extract_strided_slice %3 {offsets = [4, 0], sizes = [2, 512], strides = [1, 1]} : vector<6x512xf32> to vector<2x512xf32>
    %106 = vector.extract_strided_slice %97 {offsets = [4, 0], sizes = [2, 512], strides = [1, 1]} : vector<6x512xf32> to vector<2x512xf32>
    %107 = arith.mulf %105, %106 : vector<2x512xf32>
    %108 = arith.addf %104, %107 : vector<2x512xf32>
    %cst_29 = arith.constant -1.000000e+00 : f32
    %109 = vector.broadcast %cst_29 : f32 to vector<2x512xf32>
    %110 = arith.mulf %108, %109 : vector<2x512xf32>
    %cst_30 = arith.constant 1.000000e+00 : f32
    %111 = vector.broadcast %cst_30 : f32 to vector<2x512xf32>
    %112 = arith.addf %110, %111 : vector<2x512xf32>
    %cst_31 = arith.constant 5.000000e-01 : f32
    %113 = vector.broadcast %cst_31 : f32 to vector<2x512xf32>
    %114 = arith.mulf %112, %113 : vector<2x512xf32>
    %115 = arith.mulf %45, %114 : vector<2x512xf32>
    %cst_32 = arith.constant dense<0.000000e+00> : vector<512xf32>
    %116 = vector.multi_reduction <add>, %115, %cst_32 [0] : vector<2x512xf32> to vector<512xf32>
    %117 = vector.shape_cast %116 : vector<512xf32> to vector<1x512xf32>
    %cst_33 = arith.constant 1.000000e+00 : f32
    %118 = vector.broadcast %cst_33 : f32 to vector<1x512xf32>
    %119 = arith.mulf %46, %118 : vector<1x512xf32>
    %120 = arith.addf %117, %119 : vector<1x512xf32>
    %c2 = arith.constant 2 : index
    %c0_34 = arith.constant 0 : index
    %121 = vector.load %arg3[%c2, %c0_34] : memref<4x512xf32, #tpu.memory_space<vmem>>, vector<1x512xf32>
    tpu.vector_store %arg3[%c2, %c0_34], %120 {strides = array<i32>} : memref<4x512xf32, #tpu.memory_space<vmem>>, vector<1x512xf32>,
    %cst_35 = arith.constant 1.000000e+00 : f32
    %122 = vector.broadcast %cst_35 : f32 to vector<1x512xf32>
    %123 = arith.subf %122, %17 : vector<1x512xf32>
    %c3 = arith.constant 3 : index
    %c0_36 = arith.constant 0 : index
    %124 = vector.load %arg3[%c3, %c0_36] : memref<4x512xf32, #tpu.memory_space<vmem>>, vector<1x512xf32>
    tpu.vector_store %arg3[%c3, %c0_36], %123 {strides = array<i32>} : memref<4x512xf32, #tpu.memory_space<vmem>>, vector<1x512xf32>,
    return
  }
  func.func @transform_0(%arg0: i32) -> (i32, i32) {
    %c0_i32 = arith.constant 0 : i32
    %c0_i32_0 = arith.constant 0 : i32
    return %c0_i32, %arg0 : i32, i32
  }
  func.func @transform_1(%arg0: i32) -> (i32, i32) {
    %c0_i32 = arith.constant 0 : i32
    %c0_i32_0 = arith.constant 0 : i32
    return %c0_i32, %arg0 : i32, i32
  }
  func.func @transform_2(%arg0: i32) -> (i32, i32) {
    %c0_i32 = arith.constant 0 : i32
    %c0_i32_0 = arith.constant 0 : i32
    return %c0_i32, %arg0 : i32, i32
  }
}

</mosaic_0001>

<llo_original>
// kernel: tpu_custom_call.1
$region0: #{tpu_custom_call.1}
  #allocation0 [shape = 'u32[]', space=smem, size = 0x4, offset = 0x4, fixed_abs, tag = 'smem constant byte address 0x4 - core index']
  #allocation1 [shape = 'u32[144,128]{1,0:T(1,128)}', space=vmem, size = 0x12000, scoped, tag = 'internal scratch']
  %s0 = inlined_call_operand.hbm [shape: f32[10,512], index: 0, kind: input, shape index: {}]
  %s1 = inlined_call_operand.hbm [shape: bf16[18,512], index: 1, kind: input, shape index: {}]
  %s2 = inlined_call_operand.hbm [shape: f32[4,512], index: 2, kind: output, shape index: {}]
  %s3 = sld [smem:[#allocation0]]
  $region26: #{tpu_custom_call.1} parent=0
    _
  %s5 = ssub.s32 1, %s3
  %s6 = scalar_select 0, %s5, %s3
  $region1: #{tpu_custom_call.1} parent=0
    #allocation2 [shape = 'u8[32768]{0}', space=vmem, size = 0x8000, scoped, tag = 'input window, operand 0, single buffered']
    #allocation3 [shape = 's32[1]{0}', space=sflag, size = 0x4, scoped, tag = 'scoped memory for tpu_custom_call.1']
    #allocation4 [shape = 's32[1]{0}', space=sflag, size = 0x4, scoped, tag = 'scoped memory for tpu_custom_call.1']
    #allocation5 [shape = 'u8[24576]{0}', space=vmem, size = 0x6000, scoped, tag = 'input window, operand 1, single buffered']
    #allocation6 [shape = 's32[1]{0}', space=sflag, size = 0x4, scoped, tag = 'scoped memory for tpu_custom_call.1']
    #allocation7 [shape = 'u8[8192]{0}', space=vmem, size = 0x2000, scoped, tag = 'output window, operand 0, single buffered']
    %7 = vsyncpa [#allocation3], 0
    %8 = vsyncpa [#allocation6], 0
    %9 = vsyncpa [#allocation4], 0
    // Predicated region
    $region2: #{tpu_custom_call.1} parent=1 // pred_check
      _
    $region3: #{tpu_custom_call.1} parent=1 // pred_check_branch
      %11 = sbr.rel (0) target = $region5
    $region4: #{tpu_custom_call.1} parent=1 // pred_region
      %s13 = ssub.s32 1024, 1024
      %14 = vsyncadd [#allocation3], %s13
      %s15 = sshll.u32 [#allocation2], 4
      %s16 = int_to_ptr.vmem [resolvable:$true] %s15
      %21 = dma.hbm_to_vmem [thread:$0]  %s0, 1024, %s16, [#allocation3], 512, 512, 32
    $region5: #{tpu_custom_call.1} parent=1 // pred_fallthru
      _
    // Predicated region
    $region6: #{tpu_custom_call.1} parent=1 // pred_check
      _
    $region7: #{tpu_custom_call.1} parent=1 // pred_check_branch
      %23 = sbr.rel (0) target = $region9
    $region8: #{tpu_custom_call.1} parent=1 // pred_region
      %s25 = ssub.s32 768, 768
      %26 = vsyncadd [#allocation6], %s25
      %s27 = sshll.u32 [#allocation5], 4
      %s28 = int_to_ptr.vmem [resolvable:$true] %s27
      %33 = dma.hbm_to_vmem [thread:$0]  %s1, 768, %s28, [#allocation6], 256, 256, 16
    $region9: #{tpu_custom_call.1} parent=1 // pred_fallthru
      _
    // Predicated region
    $region10: #{tpu_custom_call.1} parent=1 // pred_check
      _
    $region11: #{tpu_custom_call.1} parent=1 // pred_check_branch
      %35 = sbr.rel (0) target = $region13
    $region12: #{tpu_custom_call.1} parent=1 // pred_region
      %36 = dma.done [#allocation3], 1024
    $region13: #{tpu_custom_call.1} parent=1 // pred_fallthru
      _
    // Predicated region
    $region14: #{tpu_custom_call.1} parent=1 // pred_check
      _
    $region15: #{tpu_custom_call.1} parent=1 // pred_check_branch
      %38 = sbr.rel (0) target = $region17
    $region16: #{tpu_custom_call.1} parent=1 // pred_region
      %39 = dma.done [#allocation6], 768
    $region17: #{tpu_custom_call.1} parent=1 // pred_fallthru
      _
    %v40 = vld [vmem:[#allocation2] sm:$0xff]
    %v41 = vld [vmem:[#allocation2 + $0x8] sm:$0xff]
    %v42 = vld [vmem:[#allocation2 + $0x10] sm:$0xff]
    %v43 = vld [vmem:[#allocation2 + $0x18] sm:$0xff]
    %v44 = vld [vmem:[#allocation2 + $0x20] sm:$0x3]
    %v45 = vld [vmem:[#allocation2 + $0x28] sm:$0x3]
    %v46 = vld [vmem:[#allocation2 + $0x30] sm:$0x3]
    %v47 = vld [vmem:[#allocation2 + $0x38] sm:$0x3]
    %v48 = vld [vmem:[#allocation5] sm:$0xff]
    %v49 = vld [vmem:[#allocation5 + $0x8] sm:$0xff]
    %v50 = vld [vmem:[#allocation5 + $0x10] sm:$0xff]
    %v51 = vld [vmem:[#allocation5 + $0x18] sm:$0xff]
    %v52 = vld [vmem:[#allocation5 + $0x20] sm:$0x11]
    %v53 = vld [vmem:[#allocation5 + $0x28] sm:$0x11]
    %v54 = vunpack.c.l.bf16 %v48
    %v55 = vunpack.c.h.bf16 %v48
    %v56 = vunpack.c.l.bf16 %v49
    %v57 = vunpack.c.h.bf16 %v49
    %v58 = vunpack.c.l.bf16 %v50
    %v59 = vunpack.c.h.bf16 %v50
    %v60 = vunpack.c.l.bf16 %v51
    %v61 = vunpack.c.h.bf16 %v51
    %v62 = vunpack.c.l.bf16 %v52
    %v63 = vunpack.c.h.bf16 %v52
    %v64 = vunpack.c.l.bf16 %v53
    %v65 = vunpack.c.h.bf16 %v53
    %v66 = vmul.f32 %v44, 10000.0
    %v67 = vmul.f32 %v45, 10000.0
    %v68 = vmul.f32 %v46, 10000.0
    %v69 = vmul.f32 %v47, 10000.0
    %v70 = vmul.f32 %v66, 1.442695
    %v71 = vpow.pop %v70
    %v72 = vmul.f32 %v67, 1.442695
    %v73 = vpow.pop %v72
    %v74 = vmul.f32 %v68, 1.442695
    %v75 = vpow.pop %v74
    %v76 = vmul.f32 %v69, 1.442695
    %v77 = vpow.pop %v76
    %v78 = vadd.f32 %v71, 1.0
    %v79 = vadd.f32 %v73, 1.0
    %v80 = vadd.f32 %v75, 1.0
    %v81 = vadd.f32 %v77, 1.0
    %v82 = vrcp.pop %v78
    %v83 = vmul.f32 1.0, %v82
    %v84 = vrcp.pop %v79
    %v85 = vmul.f32 1.0, %v84
    %v86 = vrcp.pop %v80
    %v87 = vmul.f32 1.0, %v86
    %v88 = vrcp.pop %v81
    %v89 = vmul.f32 1.0, %v88
    %v90 = vsub.f32 1.0, %v83
    %v91 = vsub.f32 1.0, %v85
    %v92 = vsub.f32 1.0, %v87
    %v93 = vsub.f32 1.0, %v89
    %v98 = vrot.slane %v90, 1
    %v99 = vrot.slane %v91, 1
    %v100 = vrot.slane %v92, 1
    %v101 = vrot.slane %v93, 1
    %v106 = vmul.f32 %v90, %v98
    %v107 = vmul.f32 %v91, %v99
    %v108 = vmul.f32 %v92, %v100
    %v109 = vmul.f32 %v93, %v101
    %v110 = vsub.f32 100.0, %v40
    %v111 = vsub.f32 100.0, %v41
    %v112 = vsub.f32 100.0, %v42
    %v113 = vsub.f32 100.0, %v43
    %v114 = vmul.f32 %v110, 0.01010101
    %v115 = vmul.f32 %v111, 0.01010101
    %v116 = vmul.f32 %v112, 0.01010101
    %v117 = vmul.f32 %v113, 0.01010101
    %vm118 = vcmask 1047558
    %v119 = vsel %vm118, %v114, -inf
    %v120 = vrot.slane %v119, 4
    %v121 = vmax.f32 %v119, %v120
    %v122 = vrot.slane %v121, 2
    %v123 = vmax.f32 %v121, %v122
    %v124 = vrot.slane %v123, 1
    %v125 = vmax.f32 %v123, %v124
    %v126 = vsel %vm118, %v115, -inf
    %v127 = vrot.slane %v126, 4
    %v128 = vmax.f32 %v126, %v127
    %v129 = vrot.slane %v128, 2
    %v130 = vmax.f32 %v128, %v129
    %v131 = vrot.slane %v130, 1
    %v132 = vmax.f32 %v130, %v131
    %v133 = vsel %vm118, %v116, -inf
    %v134 = vrot.slane %v133, 4
    %v135 = vmax.f32 %v133, %v134
    %v136 = vrot.slane %v135, 2
    %v137 = vmax.f32 %v135, %v136
    %v138 = vrot.slane %v137, 1
    %v139 = vmax.f32 %v137, %v138
    %v140 = vsel %vm118, %v117, -inf
    %v141 = vrot.slane %v140, 4
    %v142 = vmax.f32 %v140, %v141
    %v143 = vrot.slane %v142, 2
    %v144 = vmax.f32 %v142, %v143
    %v145 = vrot.slane %v144, 1
    %v146 = vmax.f32 %v144, %v145
    %v147 = vmax.f32 %v125, 1e-10
    %v148 = vmax.f32 %v132, 1e-10
    %v149 = vmax.f32 %v139, 1e-10
    %v150 = vmax.f32 %v146, 1e-10
    %v151 = vsub.f32 %v114, %v147
    %v152 = vsub.f32 %v115, %v148
    %v153 = vsub.f32 %v116, %v149
    %v154 = vsub.f32 %v117, %v150
    %v155 = vmul.f32 %v151, 10000.0
    %v156 = vmul.f32 %v152, 10000.0
    %v157 = vmul.f32 %v153, 10000.0
    %v158 = vmul.f32 %v154, 10000.0
    %v159 = vmul.f32 %v155, 1.442695
    %v160 = vpow.pop %v159
    %v161 = vmul.f32 %v156, 1.442695
    %v162 = vpow.pop %v161
    %v163 = vmul.f32 %v157, 1.442695
    %v164 = vpow.pop %v163
    %v165 = vmul.f32 %v158, 1.442695
    %v166 = vpow.pop %v165
    %v171 = vrot.slane %v160, 6
    %v172 = vrot.slane %v162, 6
    %v173 = vrot.slane %v164, 6
    %v174 = vrot.slane %v166, 6
    %v179 = vmul.f32 %v83, %v171
    %v180 = vmul.f32 %v85, %v172
    %v181 = vmul.f32 %v87, %v173
    %v182 = vmul.f32 %v89, %v174
    %v183 = vsub.f32 1e-10, %v147
    %v184 = vsub.f32 1e-10, %v148
    %v185 = vsub.f32 1e-10, %v149
    %v186 = vsub.f32 1e-10, %v150
    %v187 = vmul.f32 %v183, 10000.0
    %v188 = vmul.f32 %v184, 10000.0
    %v189 = vmul.f32 %v185, 10000.0
    %v190 = vmul.f32 %v186, 10000.0
    %v191 = vmul.f32 %v187, 1.442695
    %v192 = vpow.pop %v191
    %v193 = vmul.f32 %v188, 1.442695
    %v194 = vpow.pop %v193
    %v195 = vmul.f32 %v189, 1.442695
    %v196 = vpow.pop %v195
    %v197 = vmul.f32 %v190, 1.442695
    %v198 = vpow.pop %v197
    %v199 = vmax.f32 %v192, 1e-10
    %v200 = vmax.f32 %v194, 1e-10
    %v201 = vmax.f32 %v196, 1e-10
    %v202 = vmax.f32 %v198, 1e-10
    %vm203 = vcmask 1041408
    %v204 = vsel %vm203, %v179, 0.0
    %v205 = vrot.slane %v204, 4
    %v206 = vadd.f32 %v204, %v205
    %v207 = vrot.slane %v206, 2
    %v208 = vadd.f32 %v206, %v207
    %v209 = vrot.slane %v208, 1
    %v210 = vadd.f32 %v208, %v209
    %v211 = vsel %vm203, %v180, 0.0
    %v212 = vrot.slane %v211, 4
    %v213 = vadd.f32 %v211, %v212
    %v214 = vrot.slane %v213, 2
    %v215 = vadd.f32 %v213, %v214
    %v216 = vrot.slane %v215, 1
    %v217 = vadd.f32 %v215, %v216
    %v218 = vsel %vm203, %v181, 0.0
    %v219 = vrot.slane %v218, 4
    %v220 = vadd.f32 %v218, %v219
    %v221 = vrot.slane %v220, 2
    %v222 = vadd.f32 %v220, %v221
    %v223 = vrot.slane %v222, 1
    %v224 = vadd.f32 %v222, %v223
    %v225 = vsel %vm203, %v182, 0.0
    %v226 = vrot.slane %v225, 4
    %v227 = vadd.f32 %v225, %v226
    %v228 = vrot.slane %v227, 2
    %v229 = vadd.f32 %v227, %v228
    %v230 = vrot.slane %v229, 1
    %v231 = vadd.f32 %v229, %v230
    %v232 = vadd.f32 %v210, %v199
    %v233 = vadd.f32 %v217, %v200
    %v234 = vadd.f32 %v224, %v201
    %v235 = vadd.f32 %v231, %v202
    %v236 = vrcp.pop %v232
    %v237 = vmul.f32 1.0, %v236
    %v238 = vrcp.pop %v233
    %v239 = vmul.f32 1.0, %v238
    %v240 = vrcp.pop %v234
    %v241 = vmul.f32 1.0, %v240
    %v242 = vrcp.pop %v235
    %v243 = vmul.f32 1.0, %v242
    %v244 = vmul.f32 %v179, %v237
    %v245 = vmul.f32 %v180, %v239
    %v246 = vmul.f32 %v181, %v241
    %v247 = vmul.f32 %v182, %v243
    %v248 = vmul.f32 %v199, %v237
    %v249 = vmul.f32 %v200, %v239
    %v250 = vmul.f32 %v201, %v241
    %v251 = vmul.f32 %v202, %v243
    %v252 = vmul.f32 %v40, %v54
    %v253 = vmul.f32 %v41, %v55
    %v254 = vmul.f32 %v42, %v56
    %v255 = vmul.f32 %v43, %v57
    %v260 = vrot.slane %v252, 2
    %v261 = vrot.slane %v253, 2
    %v262 = vrot.slane %v254, 2
    %v263 = vrot.slane %v255, 2
    %v268 = vadd.f32 %v252, %v260
    %v269 = vadd.f32 %v253, %v261
    %v270 = vadd.f32 %v254, %v262
    %v271 = vadd.f32 %v255, %v263
    %v272 = vrot.slane %v252, 4
    %v273 = vrot.slane %v253, 4
    %v274 = vrot.slane %v254, 4
    %v275 = vrot.slane %v255, 4
    %v280 = vadd.f32 %v268, %v272
    %v281 = vadd.f32 %v269, %v273
    %v282 = vadd.f32 %v270, %v274
    %v283 = vadd.f32 %v271, %v275
    %v284 = vadd.f32 %v280, 1.0
    %v285 = vadd.f32 %v281, 1.0
    %v286 = vadd.f32 %v282, 1.0
    %v287 = vadd.f32 %v283, 1.0
    %v288 = vmul.f32 %v284, 0.5
    %v289 = vmul.f32 %v285, 0.5
    %v290 = vmul.f32 %v286, 0.5
    %v291 = vmul.f32 %v287, 0.5
    %v292 = vmul.f32 %v244, %v288
    %v293 = vmul.f32 %v245, %v289
    %v294 = vmul.f32 %v246, %v290
    %v295 = vmul.f32 %v247, %v291
    %v296 = vsel %vm203, %v292, 0.0
    %v297 = vrot.slane %v296, 4
    %v298 = vadd.f32 %v296, %v297
    %v299 = vrot.slane %v298, 2
    %v300 = vadd.f32 %v298, %v299
    %v301 = vrot.slane %v300, 1
    %v302 = vadd.f32 %v300, %v301
    %v303 = vsel %vm203, %v293, 0.0
    %v304 = vrot.slane %v303, 4
    %v305 = vadd.f32 %v303, %v304
    %v306 = vrot.slane %v305, 2
    %v307 = vadd.f32 %v305, %v306
    %v308 = vrot.slane %v307, 1
    %v309 = vadd.f32 %v307, %v308
    %v310 = vsel %vm203, %v294, 0.0
    %v311 = vrot.slane %v310, 4
    %v312 = vadd.f32 %v310, %v311
    %v313 = vrot.slane %v312, 2
    %v314 = vadd.f32 %v312, %v313
    %v315 = vrot.slane %v314, 1
    %v316 = vadd.f32 %v314, %v315
    %v317 = vsel %vm203, %v295, 0.0
    %v318 = vrot.slane %v317, 4
    %v319 = vadd.f32 %v317, %v318
    %v320 = vrot.slane %v319, 2
    %v321 = vadd.f32 %v319, %v320
    %v322 = vrot.slane %v321, 1
    %v323 = vadd.f32 %v321, %v322
    %v324 = vadd.f32 %v302, %v248
    %v325 = vadd.f32 %v309, %v249
    %v326 = vadd.f32 %v316, %v250
    %v327 = vadd.f32 %v323, %v251
    %v332 = vcombine.low %v324, %v325
    %v333 = vcombine.low %v326, %v327
    %v335 = vunpack.c.l.s4 1966171168
    %v336 = vunpack.c.0.s8 %v335
    %v337 = vlaneseq
    %v338 = vshrl.u32 %v337, 7
    %v339 = vsub.s32 %v336, %v338
    %v340 = vrot.slane %v332, %v339
    %v342 = vunpack.c.l.s4 1966171168
    %v343 = vunpack.c.0.s8 %v342
    %v344 = vlaneseq
    %v345 = vshrl.u32 %v344, 7
    %v346 = vsub.s32 %v343, %v345
    %v347 = vrot.slane %v333, %v346
    %v348 = vcombine.low %v340, %v347
    %v350 = vunpack.c.l.s4 1966171168
    %v351 = vunpack.c.0.s8 %v350
    %v352 = vlaneseq
    %v353 = vshrl.u32 %v352, 7
    %v354 = vsub.s32 %v351, %v353
    %v355 = vrot.slane %v348, %v354
    %v357 = vlaneseq
    %vm358 = vcmp.ge.s32.totalorder %v357, 0
    %vm359 = vcmp.lt.s32.totalorder %v357, 512
    %vm360 = vmand %vm358, %vm359
    %361 = vst.msk [vmem:[#allocation7] ss:$4 sm:$0xf] %vm360, %v355
    %v366 = vrot.slane %v54, 6
    %v367 = vrot.slane %v55, 6
    %v368 = vrot.slane %v56, 6
    %v369 = vrot.slane %v57, 6
    %v374 = vmul.f32 %v40, %v366
    %v375 = vmul.f32 %v41, %v367
    %v376 = vmul.f32 %v42, %v368
    %v377 = vmul.f32 %v43, %v369
    %v382 = vrot.slane %v58, 6
    %v383 = vrot.slane %v59, 6
    %v384 = vrot.slane %v60, 6
    %v385 = vrot.slane %v61, 6
    %v390 = vmul.f32 %v40, %v382
    %v391 = vmul.f32 %v41, %v383
    %v392 = vmul.f32 %v42, %v384
    %v393 = vmul.f32 %v43, %v385
    %v398 = vrot.slane %v390, 2
    %v399 = vrot.slane %v391, 2
    %v400 = vrot.slane %v392, 2
    %v401 = vrot.slane %v393, 2
    %v406 = vadd.f32 %v374, %v398
    %v407 = vadd.f32 %v375, %v399
    %v408 = vadd.f32 %v376, %v400
    %v409 = vadd.f32 %v377, %v401
    %v410 = vrot.slane %v390, 4
    %v411 = vrot.slane %v391, 4
    %v412 = vrot.slane %v392, 4
    %v413 = vrot.slane %v393, 4
    %v418 = vadd.f32 %v406, %v410
    %v419 = vadd.f32 %v407, %v411
    %v420 = vadd.f32 %v408, %v412
    %v421 = vadd.f32 %v409, %v413
    %v422 = vmul.f32 %v418, -1.0
    %v423 = vmul.f32 %v419, -1.0
    %v424 = vmul.f32 %v420, -1.0
    %v425 = vmul.f32 %v421, -1.0
    %v426 = vadd.f32 %v422, 1.0
    %v427 = vadd.f32 %v423, 1.0
    %v428 = vadd.f32 %v424, 1.0
    %v429 = vadd.f32 %v425, 1.0
    %v430 = vmul.f32 %v426, 0.5
    %v431 = vmul.f32 %v427, 0.5
    %v432 = vmul.f32 %v428, 0.5
    %v433 = vmul.f32 %v429, 0.5
    %v434 = vmul.f32 %v244, %v430
    %v435 = vmul.f32 %v245, %v431
    %v436 = vmul.f32 %v246, %v432
    %v437 = vmul.f32 %v247, %v433
    %v438 = vsel %vm203, %v434, 0.0
    %v439 = vrot.slane %v438, 4
    %v440 = vadd.f32 %v438, %v439
    %v441 = vrot.slane %v440, 2
    %v442 = vadd.f32 %v440, %v441
    %v443 = vrot.slane %v442, 1
    %v444 = vadd.f32 %v442, %v443
    %v445 = vsel %vm203, %v435, 0.0
    %v446 = vrot.slane %v445, 4
    %v447 = vadd.f32 %v445, %v446
    %v448 = vrot.slane %v447, 2
    %v449 = vadd.f32 %v447, %v448
    %v450 = vrot.slane %v449, 1
    %v451 = vadd.f32 %v449, %v450
    %v452 = vsel %vm203, %v436, 0.0
    %v453 = vrot.slane %v452, 4
    %v454 = vadd.f32 %v452, %v453
    %v455 = vrot.slane %v454, 2
    %v456 = vadd.f32 %v454, %v455
    %v457 = vrot.slane %v456, 1
    %v458 = vadd.f32 %v456, %v457
    %v459 = vsel %vm203, %v437, 0.0
    %v460 = vrot.slane %v459, 4
    %v461 = vadd.f32 %v459, %v460
    %v462 = vrot.slane %v461, 2
    %v463 = vadd.f32 %v461, %v462
    %v464 = vrot.slane %v463, 1
    %v465 = vadd.f32 %v463, %v464
    %v466 = vadd.f32 %v444, %v248
    %v467 = vadd.f32 %v451, %v249
    %v468 = vadd.f32 %v458, %v250
    %v469 = vadd.f32 %v465, %v251
    %v474 = vcombine.low %v466, %v467
    %v475 = vcombine.low %v468, %v469
    %v477 = vunpack.c.l.s4 1966171168
    %v478 = vunpack.c.0.s8 %v477
    %v479 = vlaneseq
    %v480 = vshrl.u32 %v479, 7
    %v481 = vsub.s32 %v478, %v480
    %v482 = vrot.slane %v474, %v481
    %v484 = vunpack.c.l.s4 1966171168
    %v485 = vunpack.c.0.s8 %v484
    %v486 = vlaneseq
    %v487 = vshrl.u32 %v486, 7
    %v488 = vsub.s32 %v485, %v487
    %v489 = vrot.slane %v475, %v488
    %v490 = vcombine.low %v482, %v489
    %v492 = vunpack.c.l.s4 1966171168
    %v493 = vunpack.c.0.s8 %v492
    %v494 = vlaneseq
    %v495 = vshrl.u32 %v494, 7
    %v496 = vsub.s32 %v493, %v495
    %v497 = vrot.slane %v490, %v496
    %s499 = scalar_lea.vmem [#allocation7], 1
    %500 = vst.msk [vmem:[%s499] ss:$4 sm:$0xf] %vm360, %v497
    %v501 = vrot.slane %v58, 4
    %v502 = vrot.slane %v59, 4
    %v503 = vrot.slane %v60, 4
    %v504 = vrot.slane %v61, 4
    %v509 = vmul.f32 %v40, %v501
    %v510 = vmul.f32 %v41, %v502
    %v511 = vmul.f32 %v42, %v503
    %v512 = vmul.f32 %v43, %v504
    %v517 = vrot.slane %v509, 2
    %v518 = vrot.slane %v510, 2
    %v519 = vrot.slane %v511, 2
    %v520 = vrot.slane %v512, 2
    %v525 = vadd.f32 %v509, %v517
    %v526 = vadd.f32 %v510, %v518
    %v527 = vadd.f32 %v511, %v519
    %v528 = vadd.f32 %v512, %v520
    %v533 = vrot.slane %v62, 4
    %v534 = vrot.slane %v63, 4
    %v535 = vrot.slane %v64, 4
    %v536 = vrot.slane %v65, 4
    %v541 = vmul.f32 %v40, %v533
    %v542 = vmul.f32 %v41, %v534
    %v543 = vmul.f32 %v42, %v535
    %v544 = vmul.f32 %v43, %v536
    %v549 = vrot.slane %v541, 4
    %v550 = vrot.slane %v542, 4
    %v551 = vrot.slane %v543, 4
    %v552 = vrot.slane %v544, 4
    %v557 = vadd.f32 %v525, %v549
    %v558 = vadd.f32 %v526, %v550
    %v559 = vadd.f32 %v527, %v551
    %v560 = vadd.f32 %v528, %v552
    %v561 = vmul.f32 %v557, -1.0
    %v562 = vmul.f32 %v558, -1.0
    %v563 = vmul.f32 %v559, -1.0
    %v564 = vmul.f32 %v560, -1.0
    %v565 = vadd.f32 %v561, 1.0
    %v566 = vadd.f32 %v562, 1.0
    %v567 = vadd.f32 %v563, 1.0
    %v568 = vadd.f32 %v564, 1.0
    %v569 = vmul.f32 %v565, 0.5
    %v570 = vmul.f32 %v566, 0.5
    %v571 = vmul.f32 %v567, 0.5
    %v572 = vmul.f32 %v568, 0.5
    %v573 = vmul.f32 %v244, %v569
    %v574 = vmul.f32 %v245, %v570
    %v575 = vmul.f32 %v246, %v571
    %v576 = vmul.f32 %v247, %v572
    %v577 = vsel %vm203, %v573, 0.0
    %v578 = vrot.slane %v577, 4
    %v579 = vadd.f32 %v577, %v578
    %v580 = vrot.slane %v579, 2
    %v581 = vadd.f32 %v579, %v580
    %v582 = vrot.slane %v581, 1
    %v583 = vadd.f32 %v581, %v582
    %v584 = vsel %vm203, %v574, 0.0
    %v585 = vrot.slane %v584, 4
    %v586 = vadd.f32 %v584, %v585
    %v587 = vrot.slane %v586, 2
    %v588 = vadd.f32 %v586, %v587
    %v589 = vrot.slane %v588, 1
    %v590 = vadd.f32 %v588, %v589
    %v591 = vsel %vm203, %v575, 0.0
    %v592 = vrot.slane %v591, 4
    %v593 = vadd.f32 %v591, %v592
    %v594 = vrot.slane %v593, 2
    %v595 = vadd.f32 %v593, %v594
    %v596 = vrot.slane %v595, 1
    %v597 = vadd.f32 %v595, %v596
    %v598 = vsel %vm203, %v576, 0.0
    %v599 = vrot.slane %v598, 4
    %v600 = vadd.f32 %v598, %v599
    %v601 = vrot.slane %v600, 2
    %v602 = vadd.f32 %v600, %v601
    %v603 = vrot.slane %v602, 1
    %v604 = vadd.f32 %v602, %v603
    %v605 = vadd.f32 %v583, %v248
    %v606 = vadd.f32 %v590, %v249
    %v607 = vadd.f32 %v597, %v250
    %v608 = vadd.f32 %v604, %v251
    %v613 = vcombine.low %v605, %v606
    %v614 = vcombine.low %v607, %v608
    %v616 = vunpack.c.l.s4 1966171168
    %v617 = vunpack.c.0.s8 %v616
    %v618 = vlaneseq
    %v619 = vshrl.u32 %v618, 7
    %v620 = vsub.s32 %v617, %v619
    %v621 = vrot.slane %v613, %v620
    %v623 = vunpack.c.l.s4 1966171168
    %v624 = vunpack.c.0.s8 %v623
    %v625 = vlaneseq
    %v626 = vshrl.u32 %v625, 7
    %v627 = vsub.s32 %v624, %v626
    %v628 = vrot.slane %v614, %v627
    %v629 = vcombine.low %v621, %v628
    %v631 = vunpack.c.l.s4 1966171168
    %v632 = vunpack.c.0.s8 %v631
    %v633 = vlaneseq
    %v634 = vshrl.u32 %v633, 7
    %v635 = vsub.s32 %v632, %v634
    %v636 = vrot.slane %v629, %v635
    %s638 = scalar_lea.vmem [#allocation7], 2
    %639 = vst.msk [vmem:[%s638] ss:$4 sm:$0xf] %vm360, %v636
    %v640 = vsub.f32 1.0, %v106
    %v641 = vsub.f32 1.0, %v107
    %v642 = vsub.f32 1.0, %v108
    %v643 = vsub.f32 1.0, %v109
    %v648 = vcombine.low %v640, %v641
    %v649 = vcombine.low %v642, %v643
    %v651 = vunpack.c.l.s4 1966171168
    %v652 = vunpack.c.0.s8 %v651
    %v653 = vlaneseq
    %v654 = vshrl.u32 %v653, 7
    %v655 = vsub.s32 %v652, %v654
    %v656 = vrot.slane %v648, %v655
    %v658 = vunpack.c.l.s4 1966171168
    %v659 = vunpack.c.0.s8 %v658
    %v660 = vlaneseq
    %v661 = vshrl.u32 %v660, 7
    %v662 = vsub.s32 %v659, %v661
    %v663 = vrot.slane %v649, %v662
    %v664 = vcombine.low %v656, %v663
    %v666 = vunpack.c.l.s4 1966171168
    %v667 = vunpack.c.0.s8 %v666
    %v668 = vlaneseq
    %v669 = vshrl.u32 %v668, 7
    %v670 = vsub.s32 %v667, %v669
    %v671 = vrot.slane %v664, %v670
    %s673 = scalar_lea.vmem [#allocation7], 3
    %674 = vst.msk [vmem:[%s673] ss:$4 sm:$0xf] %vm360, %v671
    // Predicated region
    $region18: #{tpu_custom_call.1} parent=1 // pred_check
      _
    $region19: #{tpu_custom_call.1} parent=1 // pred_check_branch
      %676 = sbr.rel (0) target = $region21
    $region20: #{tpu_custom_call.1} parent=1 // pred_region
      %s678 = ssub.s32 256, 256
      %679 = vsyncadd [#allocation4], %s678
      %s681 = sshll.u32 [#allocation7], 4
      %s682 = int_to_ptr.vmem [resolvable:$true] %s681
      %684 = dma.vmem_to_hbm [thread:$0]  %s682, 256, %s2, [#allocation4]
    $region21: #{tpu_custom_call.1} parent=1 // pred_fallthru
      _
    // Predicated region
    $region22: #{tpu_custom_call.1} parent=1 // pred_check
      _
    $region23: #{tpu_custom_call.1} parent=1 // pred_check_branch
      %686 = sbr.rel (0) target = $region25
    $region24: #{tpu_custom_call.1} parent=1 // pred_region
      %687 = dma.done [#allocation4], 256
    $region25: #{tpu_custom_call.1} parent=1 // pred_fallthru
      _
    %688 = vsyncpa [#allocation3], 1
    %689 = vsyncpa [#allocation6], 1
    %690 = vsyncpa [#allocation4], 1

</llo_original>
